<compile_context>
chip_gen: v7x
topology: tpu7x:2x2x1
jax: 0.10.0
libtpu: 0.0.40
codegen_flags: <defaults>
</compile_context>

<pallas_src>
import jax
import jax.numpy as jnp
from jax.experimental import pallas as pl
from jax.experimental.pallas import tpu as pltpu


def _senet1d_kernel(x_ref, w1f_ref, w2t_ref, e_ref, o_ref):
    # x_ref: (TB, L) lane-dense block, L = n * flow.
    x = x_ref[...]                                                     # input dtype

    # Mean-pool folded into the first FC:  ReLU(avg @ W1.T) == ReLU(x @ w1f)
    h = jnp.dot(x, w1f_ref[...], preferred_element_type=jnp.float32)   # (TB, hidden)
    h = jnp.maximum(h, 0.0)

    # Second FC + sigmoid -> per-channel scale s: (TB, n)
    s = jax.nn.sigmoid(
        jnp.dot(h.astype(w2t_ref.dtype), w2t_ref[...],
                preferred_element_type=jnp.float32))

    # Broadcast the per-channel scale across the flow axis with the 0/1
    # expansion matrix E (exact: one nonzero per output column). Avoids any
    # in-kernel reshape / cross-lane relayout of the big x tile.
    scale = jnp.dot(s.astype(e_ref.dtype), e_ref[...],
                    preferred_element_type=jnp.float32)                 # (TB, L)

    o_ref[...] = (x * scale.astype(x.dtype)).astype(o_ref.dtype)


def _pick_block_batch(b, row_bytes, target_bytes=2 * 1024 * 1024):
    """Batch-tile size TB: ~target_bytes per x block, multiple of 8, divides b,
    and (when possible) leaves >= 2 grid steps for v7x dual-TC sharding."""
    if b <= 8:
        return b
    tb = max(8, min(b, (target_bytes // max(row_bytes, 1)) // 8 * 8))
    if tb >= b and b >= 16:
        tb = max(8, (b // 2) // 8 * 8)          # keep at least 2 parallel steps
    while tb > 8 and b % tb != 0:               # must divide b (and stay mult. of 8)
        tb -= 8
    if b % tb != 0:
        tb = b                                  # fallback: single full-extent block
    return tb


def senet_1d_forward(x, w1, w2, *, block_batch=None):
    """SE-1d forward.

    x:  (b, n, flow)
    w1: (n // 16,  n)        -- PyTorch Linear(channel, channel // 16, bias=False).weight
    w2: (n, n // ratio)      -- PyTorch Linear(channel // ratio, channel, bias=False).weight
    """
    b, n, flow = x.shape
    hidden = w1.shape[0]
    assert w1.shape == (hidden, n) and w2.shape == (n, hidden)

    L = n * flow
    dtype = x.dtype
    dtype_bytes = jnp.dtype(dtype).itemsize

    # Free, contiguous flatten: (b, n, flow) -> (b, L). Lane axis becomes L.
    x2 = x.reshape(b, L)

    # Fold AdaptiveAvgPool1d(1) into the first FC:  avg @ W1.T == x2 @ w1f.
    w1f = (jnp.repeat(w1.T, flow, axis=0) / flow).astype(dtype)        # (L, hidden)
    w2t = w2.T.astype(dtype)                                           # (hidden, n)
    # Per-channel -> per-(channel, flow) broadcast matrix (0/1), exact.
    expand = jnp.repeat(jnp.eye(n, dtype=dtype), flow, axis=1)         # (n, L)

    tb = block_batch if block_batch is not None else _pick_block_batch(b, L * dtype_bytes)
    assert b % tb == 0, "block_batch must divide the batch dimension"
    grid = (b // tb,)

    out2 = pl.pallas_call(
        _senet1d_kernel,
        out_shape=jax.ShapeDtypeStruct((b, L), dtype),
        grid_spec=pltpu.PrefetchScalarGridSpec(
            num_scalar_prefetch=0,
            grid=grid,
            in_specs=[
                pl.BlockSpec((tb, L), lambda i: (i, 0)),       # x block (lane-dense)
                pl.BlockSpec((L, hidden), lambda i: (0, 0)),   # fused pool+W1 (resident)
                pl.BlockSpec((hidden, n), lambda i: (0, 0)),   # W2.T (resident)
                pl.BlockSpec((n, L), lambda i: (0, 0)),        # expansion matrix (resident)
            ],
            out_specs=pl.BlockSpec((tb, L), lambda i: (i, 0)),
        ),
        compiler_params=pltpu.CompilerParams(
            # Batch axis is embarrassingly parallel -> megacore / dual-TC sharding.
            dimension_semantics=("parallel",),
        ),
        cost_estimate=pl.CostEstimate(
            flops=2 * b * L * hidden + 2 * b * hidden * n + 2 * b * n * L + b * L,
            transcendentals=b * n,                     # sigmoid
            bytes_accessed=2 * b * L * dtype_bytes
            + (L * hidden + hidden * n + n * L) * dtype_bytes,
        ),
    )(x2, w1f, w2t, expand)

    return out2.reshape(b, n, flow)


def senet_1d_reference(x, w1, w2):
    """Pure-JAX reference matching the PyTorch module."""
    avg = jnp.mean(x, axis=-1)                         # (b, n)
    h = jnp.maximum(avg @ w1.T, 0.0)                   # (b, hidden)
    s = jax.nn.sigmoid(h @ w2.T)                       # (b, n)
    return x * s[:, :, None]


if __name__ == "__main__":
    # Small shapes consistent with the module: channel must be divisible by 16
    # (the first Linear hard-codes channel // 16, matching // ratio at ratio=16).
    batch, channel, flow, ratio = 16, 32, 16, 16
    hidden = channel // 16

    key = jax.random.PRNGKey(0)
    kx, k1, k2 = jax.random.split(key, 3)

    x = jax.random.normal(kx, (batch, channel, flow), dtype=jnp.float32)
    # PyTorch Linear weights are stored (out_features, in_features).
    w1 = jax.random.normal(k1, (hidden, channel), dtype=jnp.float32) * 0.1
    w2 = jax.random.normal(k2, (channel, channel // ratio), dtype=jnp.float32) * 0.1

    out = senet_1d_forward(x, w1, w2)      # auto-picked TB=8 -> grid=(2,), exercises tiling
    out = jax.block_until_ready(out)

    ref = senet_1d_reference(x, w1, w2)
    assert out.shape == (batch, channel, flow)
    assert jnp.allclose(out, ref, atol=1e-5, rtol=1e-5), "mismatch vs reference"

    print("KERNEL_OK")
</pallas_src>

<mosaic_0001>
module attributes {stable_mosaic.version = 11 : i64} {
  func.func @_senet1d_kernel(%arg0: i32, %arg1: memref<8x512xf32, #tpu.memory_space<vmem>>, %arg2: memref<512x2xf32, #tpu.memory_space<vmem>>, %arg3: memref<2x32xf32, #tpu.memory_space<vmem>>, %arg4: memref<32x512xf32, #tpu.memory_space<vmem>>, %arg5: memref<8x512xf32, #tpu.memory_space<vmem>>) attributes {dimension_semantics = [#tpu.dimension_semantics<parallel>], iteration_bounds = array<i64: 2>, scalar_prefetch = 0 : i64, scratch_operands = 0 : i64, tpu.core_type = #tpu.core_type<tc>, window_params = [{transform_indices = @transform_0, window_bounds = array<i64: 8, 512>}, {pipeline_mode = #tpu.pipeline_mode<synchronous>, transform_indices = @transform_1, window_bounds = array<i64: 512, 2>}, {pipeline_mode = #tpu.pipeline_mode<synchronous>, transform_indices = @transform_2, window_bounds = array<i64: 2, 32>}, {pipeline_mode = #tpu.pipeline_mode<synchronous>, transform_indices = @transform_3, window_bounds = array<i64: 32, 512>}, {transform_indices = @transform_4, window_bounds = array<i64: 8, 512>}]} {
    %c0 = arith.constant 0 : index
    %c0_0 = arith.constant 0 : index
    %0 = vector.load %arg1[%c0, %c0_0] : memref<8x512xf32, #tpu.memory_space<vmem>>, vector<8x512xf32>
    %c0_1 = arith.constant 0 : index
    %c0_2 = arith.constant 0 : index
    %1 = vector.load %arg2[%c0_1, %c0_2] : memref<512x2xf32, #tpu.memory_space<vmem>>, vector<512x2xf32>
    %cst = arith.constant dense<0.000000e+00> : vector<8x2xf32>
    %2 = tpu.matmul %0, %1, %cst {dimension_numbers = #tpu.dot_dimension_numbers<[1], [0], [0], [1], [0, 0, 1, 1], [], []>} : vector<8x512xf32>, vector<512x2xf32>, vector<8x2xf32> -> vector<8x2xf32>
    %cst_3 = arith.constant 0.000000e+00 : f32
    %3 = vector.broadcast %cst_3 : f32 to vector<8x2xf32>
    %4 = arith.maximumf %2, %3 : vector<8x2xf32>
    %c0_4 = arith.constant 0 : index
    %c0_5 = arith.constant 0 : index
    %5 = vector.load %arg3[%c0_4, %c0_5] : memref<2x32xf32, #tpu.memory_space<vmem>>, vector<2x32xf32>
    %cst_6 = arith.constant dense<0.000000e+00> : vector<8x32xf32>
    %6 = tpu.matmul %4, %5, %cst_6 {dimension_numbers = #tpu.dot_dimension_numbers<[1], [0], [0], [1], [0, 0, 1, 1], [], []>} : vector<8x2xf32>, vector<2x32xf32>, vector<8x32xf32> -> vector<8x32xf32>
    %7 = arith.negf %6 : vector<8x32xf32>
    %8 = math.exp %7 : vector<8x32xf32>
    %cst_7 = arith.constant 1.000000e+00 : f32
    %9 = vector.broadcast %cst_7 : f32 to vector<8x32xf32>
    %10 = arith.addf %9, %8 : vector<8x32xf32>
    %11 = arith.divf %9, %10 : vector<8x32xf32>
    %c0_8 = arith.constant 0 : index
    %c0_9 = arith.constant 0 : index
    %12 = vector.load %arg4[%c0_8, %c0_9] : memref<32x512xf32, #tpu.memory_space<vmem>>, vector<32x512xf32>
    %cst_10 = arith.constant dense<0.000000e+00> : vector<8x512xf32>
    %13 = tpu.matmul %11, %12, %cst_10 {dimension_numbers = #tpu.dot_dimension_numbers<[1], [0], [0], [1], [0, 0, 1, 1], [], []>} : vector<8x32xf32>, vector<32x512xf32>, vector<8x512xf32> -> vector<8x512xf32>
    %14 = arith.mulf %0, %13 : vector<8x512xf32>
    %c0_11 = arith.constant 0 : index
    %c0_12 = arith.constant 0 : index
    %15 = vector.load %arg5[%c0_11, %c0_12] : memref<8x512xf32, #tpu.memory_space<vmem>>, vector<8x512xf32>
    tpu.vector_store %arg5[%c0_11, %c0_12], %14 {strides = array<i32>} : memref<8x512xf32, #tpu.memory_space<vmem>>, vector<8x512xf32>,
    return
  }
  func.func @transform_0(%arg0: i32) -> (i32, i32) {
    %c0_i32 = arith.constant 0 : i32
    %c0_i32_0 = arith.constant 0 : i32
    return %arg0, %c0_i32 : i32, i32
  }
  func.func @transform_1(%arg0: i32) -> (i32, i32) {
    %c0_i32 = arith.constant 0 : i32
    %c0_i32_0 = arith.constant 0 : i32
    %c0_i32_1 = arith.constant 0 : i32
    return %c0_i32, %c0_i32_0 : i32, i32
  }
  func.func @transform_2(%arg0: i32) -> (i32, i32) {
    %c0_i32 = arith.constant 0 : i32
    %c0_i32_0 = arith.constant 0 : i32
    %c0_i32_1 = arith.constant 0 : i32
    return %c0_i32, %c0_i32_0 : i32, i32
  }
  func.func @transform_3(%arg0: i32) -> (i32, i32) {
    %c0_i32 = arith.constant 0 : i32
    %c0_i32_0 = arith.constant 0 : i32
    %c0_i32_1 = arith.constant 0 : i32
    return %c0_i32, %c0_i32_0 : i32, i32
  }
  func.func @transform_4(%arg0: i32) -> (i32, i32) {
    %c0_i32 = arith.constant 0 : i32
    %c0_i32_0 = arith.constant 0 : i32
    return %arg0, %c0_i32 : i32, i32
  }
}

</mosaic_0001>

<llo_original>
// kernel: tpu_custom_call.1
$region0: #{tpu_custom_call.1}
  #allocation0 [shape = 'u32[]', space=smem, size = 0x4, offset = 0x4, fixed_abs, tag = 'smem constant byte address 0x4 - core index']
  #allocation1 [shape = 'u32[144,128]{1,0:T(1,128)}', space=vmem, size = 0x12000, scoped, tag = 'internal scratch']
  %s0 = inlined_call_operand.vmem [shape: f32[16,512], index: 0, kind: input, shape index: {}]
  %s1 = inlined_call_operand.vmem [shape: f32[512,2], index: 1, kind: input, shape index: {}]
  %s2 = inlined_call_operand.vmem [shape: f32[2,32], index: 2, kind: input, shape index: {}]
  %s3 = inlined_call_operand.vmem [shape: f32[32,512], index: 3, kind: input, shape index: {}]
  %s4 = inlined_call_operand.hbm [shape: f32[16,512], index: 4, kind: output, shape index: {}]
  %s5 = sld [smem:[#allocation0]]
  $region49: #{tpu_custom_call.1} parent=0
    _
  %s7 = ssub.s32 1, %s5
  %s8 = scalar_select 0, %s7, %s5
  $region1: #{tpu_custom_call.1} parent=0
    #allocation2 [shape = 'u8[32768]{0}', space=vmem, size = 0x8000, scoped, tag = 'output window, operand 0']
    #allocation3 [shape = 's32[2]{0}', space=sflag, size = 0x8, scoped, tag = 'scoped memory for tpu_custom_call.1']
    %9 = vsyncpa [#allocation3], 0
    %s10 = scalar_lea.sflag [#allocation3], 1
    %11 = vsyncpa %s10, 0
    loop: start=0, step=1, limit=4
    $region2: #{tpu_custom_call.1} parent=1 // loop_pre_header
      _
    $region3: #{tpu_custom_call.1} parent=1 // loop_header
      %s13 = sphi 0, %s17
      %p14 = scmp.ge.s32.totalorder %s13, 4
      %s23 = sphi 0, %s25
      %s26 = sphi 0, %s23
      %s27 = sphi 0, %s26
      %s43 = sphi 0, %s27
      %s47 = sphi 0, %s47
      %s49 = sphi 0, %s47
      %s50 = sphi 0, %s49
      %s64 = sphi 0, %s50
      %s68 = sphi 0, %s68
      %s70 = sphi 0, %s68
      %s71 = sphi 0, %s70
      %s85 = sphi 0, %s71
      %s89 = sphi 0, %s89
      %s91 = sphi 0, %s89
      %s92 = sphi 0, %s91
      %s106 = sphi 0, %s92
      %s112 = sphi 0, %s114
      %s115 = sphi 0, %s112
      %s116 = sphi 0, %s115
      %s132 = sphi 0, %s116
    $region4: #{tpu_custom_call.1} parent=1 // loop_header_branch
      %16 = sbr.rel (%p14) target = $region8
    $region5: #{tpu_custom_call.1} parent=1 // loop_body
      %s18 = ssub.s32 %s13, 1
      %s19 = ssub.s32 %s13, 2
      %s20 = sadd.s32 %s13, 1
      %s21 = ssub.s32 %s13, %s20
      %p22 = scmp.eq.s32.totalorder %s21, 0
      %s24 = sadd.s32 %s23, 1
      %s25 = scalar_select %p22, %s23, %s24
      %p28 = pneg %p22
      %p29 = scmp.eq.s32.totalorder %s13, 1
      %p30 = por %p28, %p29
      %p31 = scmp.ne.s32.totalorder %s23, %s26
      %p32 = scmp.eq.s32.totalorder %s13, 0
      %p33 = por %p31, %p32
      %p34 = scmp.ne.s32.totalorder %s23, %s26
      %p35 = scmp.eq.s32.totalorder %s18, 1
      %p36 = por %p34, %p35
      %p37 = scmp.ne.s32.totalorder %s26, %s27
      %p38 = scmp.eq.s32.totalorder %s18, 0
      %p39 = por %p37, %p38
      %p40 = scmp.ne.s32.totalorder %s26, %s27
      %p41 = scmp.eq.s32.totalorder %s19, 1
      %p42 = por %p40, %p41
      %p44 = scmp.ne.s32.totalorder %s27, %s43
      %p45 = scmp.eq.s32.totalorder %s19, 0
      %p46 = por %p44, %p45
      %s48 = sadd.s32 %s47, 1
      %p51 = scmp.eq.s32.totalorder %s13, 1
      %p52 = scmp.ne.s32.totalorder %s47, %s49
      %p53 = scmp.eq.s32.totalorder %s13, 0
      %p54 = por %p52, %p53
      %p55 = scmp.ne.s32.totalorder %s47, %s49
      %p56 = scmp.eq.s32.totalorder %s18, 1
      %p57 = por %p55, %p56
      %p58 = scmp.ne.s32.totalorder %s49, %s50
      %p59 = scmp.eq.s32.totalorder %s18, 0
      %p60 = por %p58, %p59
      %p61 = scmp.ne.s32.totalorder %s49, %s50
      %p62 = scmp.eq.s32.totalorder %s19, 1
      %p63 = por %p61, %p62
      %p65 = scmp.ne.s32.totalorder %s50, %s64
      %p66 = scmp.eq.s32.totalorder %s19, 0
      %p67 = por %p65, %p66
      %s69 = sadd.s32 %s68, 1
      %p72 = scmp.eq.s32.totalorder %s13, 1
      %p73 = scmp.ne.s32.totalorder %s68, %s70
      %p74 = scmp.eq.s32.totalorder %s13, 0
      %p75 = por %p73, %p74
      %p76 = scmp.ne.s32.totalorder %s68, %s70
      %p77 = scmp.eq.s32.totalorder %s18, 1
      %p78 = por %p76, %p77
      %p79 = scmp.ne.s32.totalorder %s70, %s71
      %p80 = scmp.eq.s32.totalorder %s18, 0
      %p81 = por %p79, %p80
      %p82 = scmp.ne.s32.totalorder %s70, %s71
      %p83 = scmp.eq.s32.totalorder %s19, 1
      %p84 = por %p82, %p83
      %p86 = scmp.ne.s32.totalorder %s71, %s85
      %p87 = scmp.eq.s32.totalorder %s19, 0
      %p88 = por %p86, %p87
      %s90 = sadd.s32 %s89, 1
      %p93 = scmp.eq.s32.totalorder %s13, 1
      %p94 = scmp.ne.s32.totalorder %s89, %s91
      %p95 = scmp.eq.s32.totalorder %s13, 0
      %p96 = por %p94, %p95
      %p97 = scmp.ne.s32.totalorder %s89, %s91
      %p98 = scmp.eq.s32.totalorder %s18, 1
      %p99 = por %p97, %p98
      %p100 = scmp.ne.s32.totalorder %s91, %s92
      %p101 = scmp.eq.s32.totalorder %s18, 0
      %p102 = por %p100, %p101
      %p103 = scmp.ne.s32.totalorder %s91, %s92
      %p104 = scmp.eq.s32.totalorder %s19, 1
      %p105 = por %p103, %p104
      %p107 = scmp.ne.s32.totalorder %s92, %s106
      %p108 = scmp.eq.s32.totalorder %s19, 0
      %p109 = por %p107, %p108
      %s110 = ssub.s32 %s13, %s20
      %p111 = scmp.eq.s32.totalorder %s110, 0
      %s113 = sadd.s32 %s112, 1
      %s114 = scalar_select %p111, %s112, %s113
      %p117 = pneg %p111
      %p118 = scmp.eq.s32.totalorder %s13, 1
      %p119 = por %p117, %p118
      %p120 = scmp.ne.s32.totalorder %s112, %s115
      %p121 = scmp.eq.s32.totalorder %s13, 0
      %p122 = por %p120, %p121
      %p123 = scmp.ne.s32.totalorder %s112, %s115
      %p124 = scmp.eq.s32.totalorder %s18, 1
      %p125 = por %p123, %p124
      %p126 = scmp.ne.s32.totalorder %s115, %s116
      %p127 = scmp.eq.s32.totalorder %s18, 0
      %p128 = por %p126, %p127
      %p129 = scmp.ne.s32.totalorder %s115, %s116
      %p130 = scmp.eq.s32.totalorder %s19, 1
      %p131 = por %p129, %p130
      %p133 = scmp.ne.s32.totalorder %s116, %s132
      %p134 = scmp.eq.s32.totalorder %s19, 0
      %p135 = por %p133, %p134
      %p136 = scmp.le.s32.totalorder 1, %s13
      %p137 = scmp.lt.s32.totalorder %s13, 3
      %p138 = pnand %p136, %p137
      %p139 = pneg %p138
      // Predicated region
      $region9: #{tpu_custom_call.1} parent=5 // pred_check
        _
      $region10: #{tpu_custom_call.1} parent=5 // pred_check_branch
        %141 = sbr.rel (%p138) target = $region12
      $region11: #{tpu_custom_call.1} parent=5 // pred_region
        %s142 = ssub.s32 %s13, 1
        // Predicated region
        $region13: #{tpu_custom_call.1} parent=11 // pred_check
          %p143 = pneg %p60
        $region14: #{tpu_custom_call.1} parent=11 // pred_check_branch
          %145 = sbr.rel (%p143) target = $region16
        $region15: #{tpu_custom_call.1} parent=11 // pred_region
          _
        $region16: #{tpu_custom_call.1} parent=11 // pred_fallthru
          _
        // Predicated region
        $region17: #{tpu_custom_call.1} parent=11 // pred_check
          %p146 = pneg %p81
        $region18: #{tpu_custom_call.1} parent=11 // pred_check_branch
          %148 = sbr.rel (%p146) target = $region20
        $region19: #{tpu_custom_call.1} parent=11 // pred_region
          _
        $region20: #{tpu_custom_call.1} parent=11 // pred_fallthru
          _
        // Predicated region
        $region21: #{tpu_custom_call.1} parent=11 // pred_check
          %p149 = pneg %p102
        $region22: #{tpu_custom_call.1} parent=11 // pred_check_branch
          %151 = sbr.rel (%p149) target = $region24
        $region23: #{tpu_custom_call.1} parent=11 // pred_region
          _
        $region24: #{tpu_custom_call.1} parent=11 // pred_fallthru
          _
      $region12: #{tpu_custom_call.1} parent=5 // pred_fallthru
        _
      %p152 = scmp.lt.s32.totalorder %s13, 2
      // Predicated region
      $region25: #{tpu_custom_call.1} parent=5 // pred_check
        %p153 = pneg %p152
      $region26: #{tpu_custom_call.1} parent=5 // pred_check_branch
        %155 = sbr.rel (%p153) target = $region28
      $region27: #{tpu_custom_call.1} parent=5 // pred_region
        // Predicated region
        $region29: #{tpu_custom_call.1} parent=27 // pred_check
          %p156 = pneg %p33
        $region30: #{tpu_custom_call.1} parent=27 // pred_check_branch
          %158 = sbr.rel (%p156) target = $region32
        $region31: #{tpu_custom_call.1} parent=27 // pred_region
          %p159 = scmp.lt.s32.totalorder %s13, 1
          %s160 = scalar_select %p159, %s13, 1
          %s161 = smul.addr %s160, 4
          %s162 = smul.addr %s161, 8
          %s163 = scalar_lea.vmem %s0, %s162
        $region32: #{tpu_custom_call.1} parent=27 // pred_fallthru
          _
      $region28: #{tpu_custom_call.1} parent=5 // pred_fallthru
        _
      %p164 = scmp.le.s32.totalorder 1, %s13
      %p165 = scmp.lt.s32.totalorder %s13, 3
      %p166 = pnand %p164, %p165
      %p167 = pneg %p166
      // Predicated region
      $region33: #{tpu_custom_call.1} parent=5 // pred_check
        _
      $region34: #{tpu_custom_call.1} parent=5 // pred_check_branch
        %169 = sbr.rel (%p166) target = $region36
      $region35: #{tpu_custom_call.1} parent=5 // pred_region
        %s170 = ssub.s32 %s13, 1
        %p171 = scmp.lt.s32.totalorder %s18, 1
        %s172 = scalar_select %p171, %s18, 1
        %s173 = smul.addr %s172, 4
        %s174 = smul.addr %s173, 8
        %s175 = scalar_lea.vmem %s0, %s174
        %p176 = pneg %p39
        %p177 = pneg %p36
        %p178 = pneg %p60
        %p179 = pneg %p57
        %p180 = pneg %p81
        %p181 = pneg %p78
        %p182 = pneg %p102
        %p183 = pneg %p99
        %p184 = pneg %p128
        %p185 = pneg %p125
        %s186 = sand.u32 %s115, 1
        %s187 = scalar_lea.sflag [#allocation3], %s186
        %s188 = sand.u32 %s115, 1
        %s189 = smul.addr %s188, 32
        %s190 = scalar_lea.vmem [#allocation2], %s189
        %p191 = scmp.lt.s32.totalorder %s18, 1
        %s192 = scalar_select %p191, %s18, 1
        %s193 = smul.addr %s192, 4
        %s194 = smul.addr %s193, 8
        %s195 = scalar_lea.vmem %s0, %s194
        %v196 = vld [vmem:[%s195] sm:$0xff]
        %v197 = vld [vmem:[%s195 + $0x8] sm:$0xff]
        %v198 = vld [vmem:[%s195 + $0x10] sm:$0xff]
        %v199 = vld [vmem:[%s195 + $0x18] sm:$0xff]
        %v200 = vld [vmem:[%s1] sm:$0xff]
        %v201 = vld [vmem:[%s1 + $0x8] sm:$0xff]
        %v202 = vld [vmem:[%s1 + $0x10] sm:$0xff]
        %v203 = vld [vmem:[%s1 + $0x18] sm:$0xff]
        %v204 = vld [vmem:[%s1 + $0x20] sm:$0xff]
        %v205 = vld [vmem:[%s1 + $0x28] sm:$0xff]
        %v206 = vld [vmem:[%s1 + $0x30] sm:$0xff]
        %v207 = vld [vmem:[%s1 + $0x38] sm:$0xff]
        %v208 = vld [vmem:[%s1 + $0x40] sm:$0xff]
        %v209 = vld [vmem:[%s1 + $0x48] sm:$0xff]
        %v210 = vld [vmem:[%s1 + $0x50] sm:$0xff]
        %v211 = vld [vmem:[%s1 + $0x58] sm:$0xff]
        %v212 = vld [vmem:[%s1 + $0x60] sm:$0xff]
        %v213 = vld [vmem:[%s1 + $0x68] sm:$0xff]
        %v214 = vld [vmem:[%s1 + $0x70] sm:$0xff]
        %v215 = vld [vmem:[%s1 + $0x78] sm:$0xff]
        %v216 = vld [vmem:[%s1 + $0x80] sm:$0xff]
        %v217 = vld [vmem:[%s1 + $0x88] sm:$0xff]
        %v218 = vld [vmem:[%s1 + $0x90] sm:$0xff]
        %v219 = vld [vmem:[%s1 + $0x98] sm:$0xff]
        %v220 = vld [vmem:[%s1 + $0xa0] sm:$0xff]
        %v221 = vld [vmem:[%s1 + $0xa8] sm:$0xff]
        %v222 = vld [vmem:[%s1 + $0xb0] sm:$0xff]
        %v223 = vld [vmem:[%s1 + $0xb8] sm:$0xff]
        %v224 = vld [vmem:[%s1 + $0xc0] sm:$0xff]
        %v225 = vld [vmem:[%s1 + $0xc8] sm:$0xff]
        %v226 = vld [vmem:[%s1 + $0xd0] sm:$0xff]
        %v227 = vld [vmem:[%s1 + $0xd8] sm:$0xff]
        %v228 = vld [vmem:[%s1 + $0xe0] sm:$0xff]
        %v229 = vld [vmem:[%s1 + $0xe8] sm:$0xff]
        %v230 = vld [vmem:[%s1 + $0xf0] sm:$0xff]
        %v231 = vld [vmem:[%s1 + $0xf8] sm:$0xff]
        %v232 = vld [vmem:[%s1 + $0x100] sm:$0xff]
        %v233 = vld [vmem:[%s1 + $0x108] sm:$0xff]
        %v234 = vld [vmem:[%s1 + $0x110] sm:$0xff]
        %v235 = vld [vmem:[%s1 + $0x118] sm:$0xff]
        %v236 = vld [vmem:[%s1 + $0x120] sm:$0xff]
        %v237 = vld [vmem:[%s1 + $0x128] sm:$0xff]
        %v238 = vld [vmem:[%s1 + $0x130] sm:$0xff]
        %v239 = vld [vmem:[%s1 + $0x138] sm:$0xff]
        %v240 = vld [vmem:[%s1 + $0x140] sm:$0xff]
        %v241 = vld [vmem:[%s1 + $0x148] sm:$0xff]
        %v242 = vld [vmem:[%s1 + $0x150] sm:$0xff]
        %v243 = vld [vmem:[%s1 + $0x158] sm:$0xff]
        %v244 = vld [vmem:[%s1 + $0x160] sm:$0xff]
        %v245 = vld [vmem:[%s1 + $0x168] sm:$0xff]
        %v246 = vld [vmem:[%s1 + $0x170] sm:$0xff]
        %v247 = vld [vmem:[%s1 + $0x178] sm:$0xff]
        %v248 = vld [vmem:[%s1 + $0x180] sm:$0xff]
        %v249 = vld [vmem:[%s1 + $0x188] sm:$0xff]
        %v250 = vld [vmem:[%s1 + $0x190] sm:$0xff]
        %v251 = vld [vmem:[%s1 + $0x198] sm:$0xff]
        %v252 = vld [vmem:[%s1 + $0x1a0] sm:$0xff]
        %v253 = vld [vmem:[%s1 + $0x1a8] sm:$0xff]
        %v254 = vld [vmem:[%s1 + $0x1b0] sm:$0xff]
        %v255 = vld [vmem:[%s1 + $0x1b8] sm:$0xff]
        %v256 = vld [vmem:[%s1 + $0x1c0] sm:$0xff]
        %v257 = vld [vmem:[%s1 + $0x1c8] sm:$0xff]
        %v258 = vld [vmem:[%s1 + $0x1d0] sm:$0xff]
        %v259 = vld [vmem:[%s1 + $0x1d8] sm:$0xff]
        %v260 = vld [vmem:[%s1 + $0x1e0] sm:$0xff]
        %v261 = vld [vmem:[%s1 + $0x1e8] sm:$0xff]
        %v262 = vld [vmem:[%s1 + $0x1f0] sm:$0xff]
        %v263 = vld [vmem:[%s1 + $0x1f8] sm:$0xff]
        %264 = vmatprep.subr.mxu0 0.0
        %265 = vmatpush1.msra.mxu0 %v200
        %266 = vmatprep.subr.mxu0 0.0
        %267 = vmatpush1.msra.mxu0 %v201
        %268 = vmatprep.subr.mxu0 0.0
        %269 = vmatpush1.msra.mxu0 %v202
        %270 = vmatprep.subr.mxu0 0.0
        %271 = vmatpush1.msra.mxu0 %v203
        %272 = vmatprep.subr.mxu0 0.0
        %273 = vmatpush1.msra.mxu0 %v204
        %274 = vmatprep.subr.mxu0 0.0
        %275 = vmatpush1.msra.mxu0 %v205
        %276 = vmatprep.subr.mxu0 0.0
        %277 = vmatpush1.msra.mxu0 %v206
        %278 = vmatprep.subr.mxu0 0.0
        %279 = vmatpush1.msra.mxu0 %v207
        %280 = vmatprep.subr.mxu0 0.0
        %281 = vmatpush1.msra.mxu0 %v208
        %282 = vmatprep.subr.mxu0 0.0
        %283 = vmatpush1.msra.mxu0 %v209
        %284 = vmatprep.subr.mxu0 0.0
        %285 = vmatpush1.msra.mxu0 %v210
        %286 = vmatprep.subr.mxu0 0.0
        %287 = vmatpush1.msra.mxu0 %v211
        %288 = vmatprep.subr.mxu0 0.0
        %289 = vmatpush1.msra.mxu0 %v212
        %290 = vmatprep.subr.mxu0 0.0
        %291 = vmatpush1.msra.mxu0 %v213
        %292 = vmatprep.subr.mxu0 0.0
        %293 = vmatpush1.msra.mxu0 %v214
        %294 = vmatprep.subr.mxu0 0.0
        %295 = vmatpush1.msra.mxu0 %v215
        %296 = vmatprep.subr.mxu0 0.0
        %297 = vmatpush1.msra.mxu0 %v216
        %298 = vmatprep.subr.mxu0 0.0
        %299 = vmatpush1.msra.mxu0 %v217
        %300 = vmatprep.subr.mxu0 0.0
        %301 = vmatpush1.msra.mxu0 %v218
        %302 = vmatprep.subr.mxu0 0.0
        %303 = vmatpush1.msra.mxu0 %v219
        %304 = vmatprep.subr.mxu0 0.0
        %305 = vmatpush1.msra.mxu0 %v220
        %306 = vmatprep.subr.mxu0 0.0
        %307 = vmatpush1.msra.mxu0 %v221
        %308 = vmatprep.subr.mxu0 0.0
        %309 = vmatpush1.msra.mxu0 %v222
        %310 = vmatprep.subr.mxu0 0.0
        %311 = vmatpush1.msra.mxu0 %v223
        %312 = vmatprep.subr.mxu0 0.0
        %313 = vmatpush1.msra.mxu0 %v224
        %314 = vmatprep.subr.mxu0 0.0
        %315 = vmatpush1.msra.mxu0 %v225
        %316 = vmatprep.subr.mxu0 0.0
        %317 = vmatpush1.msra.mxu0 %v226
        %318 = vmatprep.subr.mxu0 0.0
        %319 = vmatpush1.msra.mxu0 %v227
        %320 = vmatprep.subr.mxu0 0.0
        %321 = vmatpush1.msra.mxu0 %v228
        %322 = vmatprep.subr.mxu0 0.0
        %323 = vmatpush1.msra.mxu0 %v229
        %324 = vmatprep.subr.mxu0 0.0
        %325 = vmatpush1.msra.mxu0 %v230
        %326 = vmatprep.subr.mxu0 0.0
        %327 = vmatpush1.msra.mxu0 %v231
        %328 = vmatprep.mubr.f32.mxu0 %v197
        %329 = vmatmul.mubr.f32.gmra.mrb[0].mxu0 %v196
        %v330 = vpop.f32.mrb[0].mxu0
        %v331 = vadd.f32 0.0, %v330
        %v332 = vpop.f32.mrb[0].mxu0
        %333 = vdwg.mxu0
        %334 = vmatprep.subr.mxu0 0.0
        %335 = vmatpush1.msra.mxu0 %v232
        %336 = vmatprep.subr.mxu0 0.0
        %337 = vmatpush1.msra.mxu0 %v233
        %338 = vmatprep.subr.mxu0 0.0
        %339 = vmatpush1.msra.mxu0 %v234
        %340 = vmatprep.subr.mxu0 0.0
        %341 = vmatpush1.msra.mxu0 %v235
        %342 = vmatprep.subr.mxu0 0.0
        %343 = vmatpush1.msra.mxu0 %v236
        %344 = vmatprep.subr.mxu0 0.0
        %345 = vmatpush1.msra.mxu0 %v237
        %346 = vmatprep.subr.mxu0 0.0
        %347 = vmatpush1.msra.mxu0 %v238
        %348 = vmatprep.subr.mxu0 0.0
        %349 = vmatpush1.msra.mxu0 %v239
        %350 = vmatprep.subr.mxu0 0.0
        %351 = vmatpush1.msra.mxu0 %v240
        %352 = vmatprep.subr.mxu0 0.0
        %353 = vmatpush1.msra.mxu0 %v241
        %354 = vmatprep.subr.mxu0 0.0
        %355 = vmatpush1.msra.mxu0 %v242
        %356 = vmatprep.subr.mxu0 0.0
        %357 = vmatpush1.msra.mxu0 %v243
        %358 = vmatprep.subr.mxu0 0.0
        %359 = vmatpush1.msra.mxu0 %v244
        %360 = vmatprep.subr.mxu0 0.0
        %361 = vmatpush1.msra.mxu0 %v245
        %362 = vmatprep.subr.mxu0 0.0
        %363 = vmatpush1.msra.mxu0 %v246
        %364 = vmatprep.subr.mxu0 0.0
        %365 = vmatpush1.msra.mxu0 %v247
        %366 = vmatprep.subr.mxu0 0.0
        %367 = vmatpush1.msra.mxu0 %v248
        %368 = vmatprep.subr.mxu0 0.0
        %369 = vmatpush1.msra.mxu0 %v249
        %370 = vmatprep.subr.mxu0 0.0
        %371 = vmatpush1.msra.mxu0 %v250
        %372 = vmatprep.subr.mxu0 0.0
        %373 = vmatpush1.msra.mxu0 %v251
        %374 = vmatprep.subr.mxu0 0.0
        %375 = vmatpush1.msra.mxu0 %v252
        %376 = vmatprep.subr.mxu0 0.0
        %377 = vmatpush1.msra.mxu0 %v253
        %378 = vmatprep.subr.mxu0 0.0
        %379 = vmatpush1.msra.mxu0 %v254
        %380 = vmatprep.subr.mxu0 0.0
        %381 = vmatpush1.msra.mxu0 %v255
        %382 = vmatprep.subr.mxu0 0.0
        %383 = vmatpush1.msra.mxu0 %v256
        %384 = vmatprep.subr.mxu0 0.0
        %385 = vmatpush1.msra.mxu0 %v257
        %386 = vmatprep.subr.mxu0 0.0
        %387 = vmatpush1.msra.mxu0 %v258
        %388 = vmatprep.subr.mxu0 0.0
        %389 = vmatpush1.msra.mxu0 %v259
        %390 = vmatprep.subr.mxu0 0.0
        %391 = vmatpush1.msra.mxu0 %v260
        %392 = vmatprep.subr.mxu0 0.0
        %393 = vmatpush1.msra.mxu0 %v261
        %394 = vmatprep.subr.mxu0 0.0
        %395 = vmatpush1.msra.mxu0 %v262
        %396 = vmatprep.subr.mxu0 0.0
        %397 = vmatpush1.msra.mxu0 %v263
        %398 = vmatprep.mubr.f32.mxu0 %v199
        %399 = vmatmul.mubr.f32.gmra.mrb[0].mxu0 %v198
        %v400 = vpop.f32.mrb[0].mxu0
        %v401 = vadd.f32 %v331, %v400
        %v402 = vpop.f32.mrb[0].mxu0
        %403 = vdwg.mxu0
        %v404 = vmax.f32 %v401, 0.0
        %v405 = vld [vmem:[%s2] sm:$0x3]
        %vm406 = vcmask 15360
        %v408 = vsel %vm406, %v404, 0
        %vm410 = vcmask 1041408
        %v412 = vsel %vm410, %v405, 0
        %414 = vmatprep.subr.mxu0 0.0
        %415 = vmatpush1.msra.mxu0 %v412
        %416 = vmatprep.subr.mxu0 0.0
        %417 = vmatpush1.msra.mxu0 0.0
        %418 = vmatprep.subr.mxu0 0.0
        %419 = vmatpush1.msra.mxu0 0.0
        %420 = vmatprep.subr.mxu0 0.0
        %421 = vmatpush1.msra.mxu0 0.0
        %422 = vmatprep.subr.mxu0 0.0
        %423 = vmatpush1.msra.mxu0 0.0
        %424 = vmatprep.subr.mxu0 0.0
        %425 = vmatpush1.msra.mxu0 0.0
        %426 = vmatprep.subr.mxu0 0.0
        %427 = vmatpush1.msra.mxu0 0.0
        %428 = vmatprep.subr.mxu0 0.0
        %429 = vmatpush1.msra.mxu0 0.0
        %430 = vmatprep.subr.mxu0 0.0
        %431 = vmatpush1.msra.mxu0 0.0
        %432 = vmatprep.subr.mxu0 0.0
        %433 = vmatpush1.msra.mxu0 0.0
        %434 = vmatprep.subr.mxu0 0.0
        %435 = vmatpush1.msra.mxu0 0.0
        %436 = vmatprep.subr.mxu0 0.0
        %437 = vmatpush1.msra.mxu0 0.0
        %438 = vmatprep.subr.mxu0 0.0
        %439 = vmatpush1.msra.mxu0 0.0
        %440 = vmatprep.subr.mxu0 0.0
        %441 = vmatpush1.msra.mxu0 0.0
        %442 = vmatprep.subr.mxu0 0.0
        %443 = vmatpush1.msra.mxu0 0.0
        %444 = vmatprep.subr.mxu0 0.0
        %445 = vmatpush1.msra.mxu0 0.0
        %446 = vmatprep.subr.mxu0 0.0
        %447 = vmatpush1.msra.mxu0 0.0
        %448 = vmatprep.subr.mxu0 0.0
        %449 = vmatpush1.msra.mxu0 0.0
        %450 = vmatprep.subr.mxu0 0.0
        %451 = vmatpush1.msra.mxu0 0.0
        %452 = vmatprep.subr.mxu0 0.0
        %453 = vmatpush1.msra.mxu0 0.0
        %454 = vmatprep.subr.mxu0 0.0
        %455 = vmatpush1.msra.mxu0 0.0
        %456 = vmatprep.subr.mxu0 0.0
        %457 = vmatpush1.msra.mxu0 0.0
        %458 = vmatprep.subr.mxu0 0.0
        %459 = vmatpush1.msra.mxu0 0.0
        %460 = vmatprep.subr.mxu0 0.0
        %461 = vmatpush1.msra.mxu0 0.0
        %462 = vmatprep.subr.mxu0 0.0
        %463 = vmatpush1.msra.mxu0 0.0
        %464 = vmatprep.subr.mxu0 0.0
        %465 = vmatpush1.msra.mxu0 0.0
        %466 = vmatprep.subr.mxu0 0.0
        %467 = vmatpush1.msra.mxu0 0.0
        %468 = vmatprep.subr.mxu0 0.0
        %469 = vmatpush1.msra.mxu0 0.0
        %470 = vmatprep.subr.mxu0 0.0
        %471 = vmatpush1.msra.mxu0 0.0
        %472 = vmatprep.subr.mxu0 0.0
        %473 = vmatpush1.msra.mxu0 0.0
        %474 = vmatprep.subr.mxu0 0.0
        %475 = vmatpush1.msra.mxu0 0.0
        %476 = vmatprep.subr.mxu0 0.0
        %477 = vmatpush1.msra.mxu0 0.0
        %478 = vmatprep.mubr.f32.mxu0 0.0
        %479 = vmatmul.mubr.f32.gmra.mrb[0].mxu0 %v408
        %v480 = vpop.f32.mrb[0].mxu0
        %v481 = vadd.f32 0.0, %v480
        %v482 = vpop.f32.mrb[0].mxu0
        %483 = vdwg.mxu0
        %v484 = vxor.u32 %v481, 2147483648
        %v485 = vmul.f32 %v484, 1.442695
        %v486 = vpow.pop %v485
        %v487 = vadd.f32 %v486, 1.0
        %v488 = vrcp.pop %v487
        %v489 = vmul.f32 1.0, %v488
        %v490 = vld [vmem:[%s3] sm:$0xff]
        %v491 = vld [vmem:[%s3 + $0x8] sm:$0xff]
        %v492 = vld [vmem:[%s3 + $0x10] sm:$0xff]
        %v493 = vld [vmem:[%s3 + $0x18] sm:$0xff]
        %v494 = vld [vmem:[%s3 + $0x20] sm:$0xff]
        %v495 = vld [vmem:[%s3 + $0x28] sm:$0xff]
        %v496 = vld [vmem:[%s3 + $0x30] sm:$0xff]
        %v497 = vld [vmem:[%s3 + $0x38] sm:$0xff]
        %v498 = vld [vmem:[%s3 + $0x40] sm:$0xff]
        %v499 = vld [vmem:[%s3 + $0x48] sm:$0xff]
        %v500 = vld [vmem:[%s3 + $0x50] sm:$0xff]
        %v501 = vld [vmem:[%s3 + $0x58] sm:$0xff]
        %v502 = vld [vmem:[%s3 + $0x60] sm:$0xff]
        %v503 = vld [vmem:[%s3 + $0x68] sm:$0xff]
        %v504 = vld [vmem:[%s3 + $0x70] sm:$0xff]
        %v505 = vld [vmem:[%s3 + $0x78] sm:$0xff]
        %vm506 = vcmask 261120
        %v508 = vsel %vm506, %v489, 0
        %510 = vmatprep.subr.mxu0 %v491
        %511 = vmatpush1.msra.mxu0 %v490
        %512 = vmatprep.subr.mxu0 %v495
        %513 = vmatpush1.msra.mxu0 %v494
        %514 = vmatprep.subr.mxu0 %v499
        %515 = vmatpush1.msra.mxu0 %v498
        %516 = vmatprep.subr.mxu0 %v503
        %517 = vmatpush1.msra.mxu0 %v502
        %518 = vmatprep.subr.mxu0 0.0
        %519 = vmatpush1.msra.mxu0 0.0
        %520 = vmatprep.subr.mxu0 0.0
        %521 = vmatpush1.msra.mxu0 0.0
        %522 = vmatprep.subr.mxu0 0.0
        %523 = vmatpush1.msra.mxu0 0.0
        %524 = vmatprep.subr.mxu0 0.0
        %525 = vmatpush1.msra.mxu0 0.0
        %526 = vmatprep.subr.mxu0 0.0
        %527 = vmatpush1.msra.mxu0 0.0
        %528 = vmatprep.subr.mxu0 0.0
        %529 = vmatpush1.msra.mxu0 0.0
        %530 = vmatprep.subr.mxu0 0.0
        %531 = vmatpush1.msra.mxu0 0.0
        %532 = vmatprep.subr.mxu0 0.0
        %533 = vmatpush1.msra.mxu0 0.0
        %534 = vmatprep.subr.mxu0 0.0
        %535 = vmatpush1.msra.mxu0 0.0
        %536 = vmatprep.subr.mxu0 0.0
        %537 = vmatpush1.msra.mxu0 0.0
        %538 = vmatprep.subr.mxu0 0.0
        %539 = vmatpush1.msra.mxu0 0.0
        %540 = vmatprep.subr.mxu0 0.0
        %541 = vmatpush1.msra.mxu0 0.0
        %542 = vmatprep.subr.mxu0 0.0
        %543 = vmatpush1.msra.mxu0 0.0
        %544 = vmatprep.subr.mxu0 0.0
        %545 = vmatpush1.msra.mxu0 0.0
        %546 = vmatprep.subr.mxu0 0.0
        %547 = vmatpush1.msra.mxu0 0.0
        %548 = vmatprep.subr.mxu0 0.0
        %549 = vmatpush1.msra.mxu0 0.0
        %550 = vmatprep.subr.mxu0 0.0
        %551 = vmatpush1.msra.mxu0 0.0
        %552 = vmatprep.subr.mxu0 0.0
        %553 = vmatpush1.msra.mxu0 0.0
        %554 = vmatprep.subr.mxu0 0.0
        %555 = vmatpush1.msra.mxu0 0.0
        %556 = vmatprep.subr.mxu0 0.0
        %557 = vmatpush1.msra.mxu0 0.0
        %558 = vmatprep.subr.mxu0 0.0
        %559 = vmatpush1.msra.mxu0 0.0
        %560 = vmatprep.subr.mxu0 0.0
        %561 = vmatpush1.msra.mxu0 0.0
        %562 = vmatprep.subr.mxu0 0.0
        %563 = vmatpush1.msra.mxu0 0.0
        %564 = vmatprep.subr.mxu0 0.0
        %565 = vmatpush1.msra.mxu0 0.0
        %566 = vmatprep.subr.mxu0 0.0
        %567 = vmatpush1.msra.mxu0 0.0
        %568 = vmatprep.subr.mxu0 0.0
        %569 = vmatpush1.msra.mxu0 0.0
        %570 = vmatprep.subr.mxu0 0.0
        %571 = vmatpush1.msra.mxu0 0.0
        %572 = vmatprep.subr.mxu0 0.0
        %573 = vmatpush1.msra.mxu0 0.0
        %574 = vmatprep.mubr.f32.mxu0 0.0
        %575 = vmatmul.mubr.f32.gmra.mrb[0].mxu0 %v508
        %v576 = vpop.f32.mrb[0].mxu0
        %v577 = vadd.f32 0.0, %v576
        %v578 = vpop.f32.mrb[0].mxu0
        %v579 = vadd.f32 0.0, %v578
        %580 = vdwg.mxu0
        %581 = vmatprep.subr.mxu0 %v493
        %582 = vmatpush1.msra.mxu0 %v492
        %583 = vmatprep.subr.mxu0 %v497
        %584 = vmatpush1.msra.mxu0 %v496
        %585 = vmatprep.subr.mxu0 %v501
        %586 = vmatpush1.msra.mxu0 %v500
        %587 = vmatprep.subr.mxu0 %v505
        %588 = vmatpush1.msra.mxu0 %v504
        %589 = vmatprep.subr.mxu0 0.0
        %590 = vmatpush1.msra.mxu0 0.0
        %591 = vmatprep.subr.mxu0 0.0
        %592 = vmatpush1.msra.mxu0 0.0
        %593 = vmatprep.subr.mxu0 0.0
        %594 = vmatpush1.msra.mxu0 0.0
        %595 = vmatprep.subr.mxu0 0.0
        %596 = vmatpush1.msra.mxu0 0.0
        %597 = vmatprep.subr.mxu0 0.0
        %598 = vmatpush1.msra.mxu0 0.0
        %599 = vmatprep.subr.mxu0 0.0
        %600 = vmatpush1.msra.mxu0 0.0
        %601 = vmatprep.subr.mxu0 0.0
        %602 = vmatpush1.msra.mxu0 0.0
        %603 = vmatprep.subr.mxu0 0.0
        %604 = vmatpush1.msra.mxu0 0.0
        %605 = vmatprep.subr.mxu0 0.0
        %606 = vmatpush1.msra.mxu0 0.0
        %607 = vmatprep.subr.mxu0 0.0
        %608 = vmatpush1.msra.mxu0 0.0
        %609 = vmatprep.subr.mxu0 0.0
        %610 = vmatpush1.msra.mxu0 0.0
        %611 = vmatprep.subr.mxu0 0.0
        %612 = vmatpush1.msra.mxu0 0.0
        %613 = vmatprep.subr.mxu0 0.0
        %614 = vmatpush1.msra.mxu0 0.0
        %615 = vmatprep.subr.mxu0 0.0
        %616 = vmatpush1.msra.mxu0 0.0
        %617 = vmatprep.subr.mxu0 0.0
        %618 = vmatpush1.msra.mxu0 0.0
        %619 = vmatprep.subr.mxu0 0.0
        %620 = vmatpush1.msra.mxu0 0.0
        %621 = vmatprep.subr.mxu0 0.0
        %622 = vmatpush1.msra.mxu0 0.0
        %623 = vmatprep.subr.mxu0 0.0
        %624 = vmatpush1.msra.mxu0 0.0
        %625 = vmatprep.subr.mxu0 0.0
        %626 = vmatpush1.msra.mxu0 0.0
        %627 = vmatprep.subr.mxu0 0.0
        %628 = vmatpush1.msra.mxu0 0.0
        %629 = vmatprep.subr.mxu0 0.0
        %630 = vmatpush1.msra.mxu0 0.0
        %631 = vmatprep.subr.mxu0 0.0
        %632 = vmatpush1.msra.mxu0 0.0
        %633 = vmatprep.subr.mxu0 0.0
        %634 = vmatpush1.msra.mxu0 0.0
        %635 = vmatprep.subr.mxu0 0.0
        %636 = vmatpush1.msra.mxu0 0.0
        %637 = vmatprep.subr.mxu0 0.0
        %638 = vmatpush1.msra.mxu0 0.0
        %639 = vmatprep.subr.mxu0 0.0
        %640 = vmatpush1.msra.mxu0 0.0
        %641 = vmatprep.subr.mxu0 0.0
        %642 = vmatpush1.msra.mxu0 0.0
        %643 = vmatprep.subr.mxu0 0.0
        %644 = vmatpush1.msra.mxu0 0.0
        %645 = vmatprep.mubr.f32.mxu0 0.0
        %646 = vmatmul.mubr.f32.gmra.mrb[0].mxu0 %v508
        %v647 = vpop.f32.mrb[0].mxu0
        %v648 = vadd.f32 0.0, %v647
        %v649 = vpop.f32.mrb[0].mxu0
        %v650 = vadd.f32 0.0, %v649
        %651 = vdwg.mxu0
        %v652 = vmul.f32 %v196, %v577
        %v653 = vmul.f32 %v197, %v579
        %v654 = vmul.f32 %v198, %v648
        %v655 = vmul.f32 %v199, %v650
        %656 = vst [vmem:[%s190] sm:$0xff] %v652
        %657 = vst [vmem:[%s190 + $0x8] sm:$0xff] %v653
        %658 = vst [vmem:[%s190 + $0x10] sm:$0xff] %v654
        %659 = vst [vmem:[%s190 + $0x18] sm:$0xff] %v655
        %s660 = sand.u32 %s115, 1
        %s661 = scalar_lea.sflag [#allocation3], %s660
        %s662 = sand.u32 %s115, 1
        %s663 = smul.addr %s662, 32
        %s664 = scalar_lea.vmem [#allocation2], %s663
        // Predicated region
        $region37: #{tpu_custom_call.1} parent=35 // pred_check
          %p665 = pneg %p125
        $region38: #{tpu_custom_call.1} parent=35 // pred_check_branch
          %667 = sbr.rel (%p665) target = $region40
        $region39: #{tpu_custom_call.1} parent=35 // pred_region
          %s669 = ssub.s32 512, 512
          %670 = vsyncadd %s661, %s669
          %s671 = smul.addr %s18, 4
          %s672 = smul.addr %s671, 128
          %s673 = scalar_lea.hbm %s4, %s672
          %s675 = sshll.u32 %s664, 4
          %s676 = int_to_ptr.vmem [resolvable:$true] %s675
          %678 = dma.vmem_to_hbm [thread:$0]  %s676, 512, %s673, %s661
        $region40: #{tpu_custom_call.1} parent=35 // pred_fallthru
          _
      $region36: #{tpu_custom_call.1} parent=5 // pred_fallthru
        _
      %p679 = scmp.le.s32.totalorder 2, %s13
      // Predicated region
      $region41: #{tpu_custom_call.1} parent=5 // pred_check
        %p680 = pneg %p679
      $region42: #{tpu_custom_call.1} parent=5 // pred_check_branch
        %682 = sbr.rel (%p680) target = $region44
      $region43: #{tpu_custom_call.1} parent=5 // pred_region
        %s683 = ssub.s32 %s13, 2
        // Predicated region
        $region45: #{tpu_custom_call.1} parent=43 // pred_check
          %p684 = pneg %p131
        $region46: #{tpu_custom_call.1} parent=43 // pred_check_branch
          %686 = sbr.rel (%p684) target = $region48
        $region47: #{tpu_custom_call.1} parent=43 // pred_region
          %s687 = sand.u32 %s116, 1
          %s688 = scalar_lea.sflag [#allocation3], %s687
          %s689 = sand.u32 %s116, 1
          %s690 = smul.addr %s689, 32
          %s691 = scalar_lea.vmem [#allocation2], %s690
          %692 = dma.done %s688, 512
        $region48: #{tpu_custom_call.1} parent=43 // pred_fallthru
          _
      $region44: #{tpu_custom_call.1} parent=5 // pred_fallthru
        _
    $region6: #{tpu_custom_call.1} parent=1 // loop_footer
      %s17 = sadd.s32 1, %s13
    $region7: #{tpu_custom_call.1} parent=1 // loop_footer_branch
      %12 = sbr.rel target = $region3
    $region8: #{tpu_custom_call.1} parent=1 // loop_exit
      _
    %693 = vsyncpa [#allocation3], 1
    %s694 = scalar_lea.sflag [#allocation3], 1
    %695 = vsyncpa %s694, 1

</llo_original>
